<compile_context>
chip_gen: v5e
topology: v5e:2x2
jax: 0.10.0
libtpu: 0.0.40
codegen_flags: <defaults>
</compile_context>

<pallas_src>
import jax
import jax.numpy as jnp
from jax.experimental import pallas as pl
from jax.experimental.pallas import tpu as pltpu


def _round_up(x, m):
    return (x + m - 1) // m * m


def _sublane_multiple(dtype):
    # 32-bit -> 8 sublanes, 16-bit -> 16, 8-bit -> 32 (packed vregs).
    bits = jnp.dtype(dtype).itemsize * 8
    return max(8, 256 // bits)


def _conv_glu_kernel(x_ref, wa_ref, wg_ref, ba_ref, bg_ref, o_ref):
    # x: (TB, K*D) f32; wa/wg: (K*D, TN) (possibly bf16 in HBM/VMEM);
    # ba/bg: (1, TN) f32; o: (TB, TN).
    x = x_ref[...]
    wa = wa_ref[...].astype(x.dtype)   # cast up in-vreg; HBM stream stays narrow
    wg = wg_ref[...].astype(x.dtype)
    a = jnp.dot(x, wa, preferred_element_type=jnp.float32)
    g = jnp.dot(x, wg, preferred_element_type=jnp.float32)
    a = a + ba_ref[...].astype(jnp.float32)
    g = g + bg_ref[...].astype(jnp.float32)
    o_ref[...] = (a * jax.nn.sigmoid(g)).astype(o_ref.dtype)


def prepare_conv_glu_params(weight, bias, kernel_size, param_dtype=jnp.bfloat16):
    """One-time parameter preprocessing (hoisted out of the per-token path).

    weight: (2D, D, K) Conv1d weight; bias: (2D,).
    Returns (w_a, w_g, b_a, b_g, D). Feature dim padded to a multiple of 128
    lanes; w_*: (K*D, Dp) stored in `param_dtype` (bf16 by default -> half the
    HBM weight stream); b_*: (1, Dp) kept in f32.
    """
    two_d, D, K = weight.shape
    assert two_d == 2 * D and K == kernel_size
    Dp = _round_up(D, 128)

    # (2D, D, K) -> (K, D, 2D) -> (K*D, 2D); row-major (k, d) flatten matches
    # the row-major flatten of the (B, K, D) input window.
    w2 = jnp.transpose(weight, (2, 1, 0)).reshape(K * D, 2 * D)
    w_a, w_g = w2[:, :D], w2[:, D:]
    b_a = bias[:D].reshape(1, D).astype(jnp.float32)
    b_g = bias[D:].reshape(1, D).astype(jnp.float32)

    pad_n = Dp - D
    if pad_n:
        w_a = jnp.pad(w_a, ((0, 0), (0, pad_n)))
        w_g = jnp.pad(w_g, ((0, 0), (0, pad_n)))
        b_a = jnp.pad(b_a, ((0, 0), (0, pad_n)))
        b_g = jnp.pad(b_g, ((0, 0), (0, pad_n)))

    w_a = w_a.astype(param_dtype)
    w_g = w_g.astype(param_dtype)
    return w_a, w_g, b_a, b_g, D


def _pick_tn(KD, Dp, TB, w_itemsize, x_itemsize, out_itemsize):
    """Largest N tile (512/256/128) whose double-buffered tiles fit a ~24 MiB
    budget (safe against v7x's 64 MiB physical VMEM; v5e/v6e have 128 MiB)."""
    budget = 24 * 1024 * 1024
    est = None
    for tn in (512, 256, 128):
        if Dp % tn != 0:
            continue
        est = (2 * 2 * KD * tn * w_itemsize      # double-buffered w_a, w_g
               + 2 * TB * KD * x_itemsize        # double-buffered x
               + 2 * TB * tn * out_itemsize      # double-buffered out
               + 2 * 2 * tn * 4)                 # biases
        if est <= budget:
            return tn, est
    return 128, est


def _conv_glu_matmul(x2, w_a, w_g, b_a, b_g, D, out_dtype):
    """x2: (R, K*D) flattened windows.  Returns (R, D) GLU outputs."""
    R, KD = x2.shape
    Dp = w_a.shape[1]

    sub = _sublane_multiple(x2.dtype)
    TB = 128 if R >= 128 else _round_up(R, sub)
    Rp = _round_up(R, TB)
    if Rp != R:
        x2 = jnp.pad(x2, ((0, Rp - R), (0, 0)))

    w_item = jnp.dtype(w_a.dtype).itemsize
    x_item = jnp.dtype(x2.dtype).itemsize
    o_item = jnp.dtype(out_dtype).itemsize
    TN, vmem_est = _pick_tn(KD, Dp, TB, w_item, x_item, o_item)

    # Explicit scoped-VMEM limit: above v5e's 16 MiB default, at most 48 MiB
    # (headroom inside v7x's 64 MiB physical VMEM).
    vmem_limit = min(48 * 1024 * 1024, max(32 * 1024 * 1024, int(vmem_est * 2)))

    grid = (Dp // TN, Rp // TB)  # N outer (parallel), B inner -> weights stay resident

    cost = pl.CostEstimate(
        flops=2 * 2 * Rp * KD * Dp,                 # two matmuls
        transcendentals=Rp * Dp,                    # sigmoid
        bytes_accessed=(2 * KD * Dp * w_item        # weight stream (once)
                        + Rp * KD * x_item          # activations
                        + Rp * Dp * o_item          # output
                        + 2 * Dp * 4))              # biases

    out = pl.pallas_call(
        _conv_glu_kernel,
        out_shape=jax.ShapeDtypeStruct((Rp, Dp), out_dtype),
        grid=grid,
        in_specs=[
            pl.BlockSpec((TB, KD), lambda j, i: (i, 0)),   # x window
            pl.BlockSpec((KD, TN), lambda j, i: (0, j)),   # w_a (indep. of B axis)
            pl.BlockSpec((KD, TN), lambda j, i: (0, j)),   # w_g
            pl.BlockSpec((1, TN), lambda j, i: (0, j)),    # b_a
            pl.BlockSpec((1, TN), lambda j, i: (0, j)),    # b_g
        ],
        out_specs=pl.BlockSpec((TB, TN), lambda j, i: (i, j)),
        compiler_params=pltpu.CompilerParams(
            dimension_semantics=("parallel", "arbitrary"),  # v7x megacore splits N
            vmem_limit_bytes=vmem_limit),
        cost_estimate=cost,
    )(x2, w_a, w_g, b_a, b_g)

    return out[:R, :D]


def conv_glu_decoder(H, params, kernel_size):
    """H: (B, T, D); params from prepare_conv_glu_params.  Returns (B, 1, D)."""
    w_a, w_g, b_a, b_g, D = params
    B, T, D_in = H.shape
    assert D_in == D
    K = kernel_size

    # Replicate F.pad(H_t, (K - T, 0)): keep the last K timesteps,
    # left-zero-pad when T < K.
    if T >= K:
        x = H[:, T - K:, :]                               # (B, K, D)
    else:
        x = jnp.pad(H, ((0, 0), (K - T, 0), (0, 0)))      # (B, K, D)
    x2 = x.reshape(B, K * D)                              # activations stay f32

    out = _conv_glu_matmul(x2, w_a, w_g, b_a, b_g, D, H.dtype)  # (B, D)
    return out.reshape(B, 1, D)


def conv_glu_decoder_fused(H, params, kernel_size, num_steps):
    """Amortize the weight HBM stream across `num_steps` decode positions.

    Computes the module output for the last `num_steps` positions of H in ONE
    pallas_call: out[:, s, :] == ConvGLUDecoder(H[:, :T-num_steps+s+1, :]).
    Returns (B, num_steps, D).
    """
    w_a, w_g, b_a, b_g, D = params
    B, T, D_in = H.shape
    assert D_in == D
    K = kernel_size
    S = num_steps
    assert 1 <= S <= T

    Hp = jnp.pad(H, ((0, 0), (K - 1, 0), (0, 0)))          # causal left pad
    windows = [Hp[:, p:p + K, :] for p in range(T - S, T)]  # S x (B, K, D)
    x = jnp.stack(windows, axis=0)                          # (S, B, K, D)
    x2 = x.reshape(S * B, K * D)

    out = _conv_glu_matmul(x2, w_a, w_g, b_a, b_g, D, H.dtype)  # (S*B, D)
    return jnp.transpose(out.reshape(S, B, D), (1, 0, 2))       # (B, S, D)


def _reference(H, weight, bias, kernel_size):
    """Pure-JAX reference replicating the PyTorch module exactly."""
    B, T, D = H.shape
    K = kernel_size
    Ht = jnp.transpose(H, (0, 2, 1))                      # (B, D, T)
    if T >= K:
        Hp = Ht[:, :, T - K:]
    else:
        Hp = jnp.pad(Ht, ((0, 0), (0, 0), (K - T, 0)))
    y = jnp.einsum('bdk,odk->bo', Hp, weight) + bias      # (B, 2D)
    y = y[:, None, :]                                     # (B, 1, 2D)
    a, g = y[..., :D], y[..., D:]
    return a * jax.nn.sigmoid(g)                          # (B, 1, D)


if __name__ == "__main__":
    # Module config: input_dim=D, kernel_size=K (dropout / padding_idx unused
    # in the forward pass).
    B, T, D, K = 2, 8, 32, 3

    key = jax.random.PRNGKey(0)
    k_h, k_w, k_b = jax.random.split(key, 3)

    H = jax.random.normal(k_h, (B, T, D), dtype=jnp.float32)
    weight = jax.random.normal(k_w, (2 * D, D, K), dtype=jnp.float32) * (1.0 / (D * K) ** 0.5)
    bias = jax.random.normal(k_b, (2 * D,), dtype=jnp.float32) * 0.1

    ref = _reference(H, weight, bias, K)

    # f32-stored weights: tight check against the reference.
    params_f32 = prepare_conv_glu_params(weight, bias, K, param_dtype=jnp.float32)
    out = jax.block_until_ready(conv_glu_decoder(H, params_f32, K))
    assert out.shape == (B, 1, D), out.shape
    assert jnp.allclose(out, ref, atol=1e-5, rtol=1e-5), float(jnp.max(jnp.abs(out - ref)))

    # Default path: bf16-stored weights, f32 activations + f32 accumulation.
    params = prepare_conv_glu_params(weight, bias, K)
    out_bf16 = jax.block_until_ready(conv_glu_decoder(H, params, K))
    assert out_bf16.shape == (B, 1, D), out_bf16.shape
    assert jnp.allclose(out_bf16, ref, atol=5e-2, rtol=5e-2), \
        float(jnp.max(jnp.abs(out_bf16 - ref)))

    # Left-zero-padding branch (T < K).
    H_short = H[:, :2, :]
    ref_short = _reference(H_short, weight, bias, K)
    out_short = jax.block_until_ready(conv_glu_decoder(H_short, params_f32, K))
    assert jnp.allclose(out_short, ref_short, atol=1e-5, rtol=1e-5)

    # Fused multi-step decode: S positions share one weight stream.
    S = 4
    fused = jax.block_until_ready(conv_glu_decoder_fused(H, params_f32, K, S))
    assert fused.shape == (B, S, D), fused.shape
    for s in range(S):
        ref_s = _reference(H[:, :T - S + s + 1, :], weight, bias, K)
        assert jnp.allclose(fused[:, s:s + 1, :], ref_s, atol=1e-5, rtol=1e-5), s

    print("KERNEL_OK")
</pallas_src>

<mosaic_0001>
module attributes {stable_mosaic.version = 11 : i64} {
  func.func @_conv_glu_kernel(%arg0: i32, %arg1: i32, %arg2: memref<8x96xf32, #tpu.memory_space<vmem>>, %arg3: memref<96x128xf32, #tpu.memory_space<vmem>>, %arg4: memref<96x128xf32, #tpu.memory_space<vmem>>, %arg5: memref<1x128xf32, #tpu.memory_space<vmem>>, %arg6: memref<1x128xf32, #tpu.memory_space<vmem>>, %arg7: memref<8x128xf32, #tpu.memory_space<vmem>>) attributes {dimension_semantics = [#tpu.dimension_semantics<parallel>, #tpu.dimension_semantics<arbitrary>], iteration_bounds = array<i64: 1, 1>, scalar_prefetch = 0 : i64, scratch_operands = 0 : i64, tpu.core_type = #tpu.core_type<tc>, window_params = [{transform_indices = @transform_0, window_bounds = array<i64: 8, 96>}, {transform_indices = @transform_1, window_bounds = array<i64: 96, 128>}, {transform_indices = @transform_2, window_bounds = array<i64: 96, 128>}, {transform_indices = @transform_3, window_bounds = array<i64: 1, 128>}, {transform_indices = @transform_4, window_bounds = array<i64: 1, 128>}, {transform_indices = @transform_5, window_bounds = array<i64: 8, 128>}]} {
    %c0 = arith.constant 0 : index
    %c0_0 = arith.constant 0 : index
    %0 = vector.load %arg2[%c0, %c0_0] : memref<8x96xf32, #tpu.memory_space<vmem>>, vector<8x96xf32>
    %c0_1 = arith.constant 0 : index
    %c0_2 = arith.constant 0 : index
    %1 = vector.load %arg3[%c0_1, %c0_2] : memref<96x128xf32, #tpu.memory_space<vmem>>, vector<96x128xf32>
    %c0_3 = arith.constant 0 : index
    %c0_4 = arith.constant 0 : index
    %2 = vector.load %arg4[%c0_3, %c0_4] : memref<96x128xf32, #tpu.memory_space<vmem>>, vector<96x128xf32>
    %cst = arith.constant dense<0.000000e+00> : vector<8x128xf32>
    %3 = tpu.matmul %0, %1, %cst {dimension_numbers = #tpu.dot_dimension_numbers<[1], [0], [0], [1], [0, 0, 1, 1], [], []>} : vector<8x96xf32>, vector<96x128xf32>, vector<8x128xf32> -> vector<8x128xf32>
    %cst_5 = arith.constant dense<0.000000e+00> : vector<8x128xf32>
    %4 = tpu.matmul %0, %2, %cst_5 {dimension_numbers = #tpu.dot_dimension_numbers<[1], [0], [0], [1], [0, 0, 1, 1], [], []>} : vector<8x96xf32>, vector<96x128xf32>, vector<8x128xf32> -> vector<8x128xf32>
    %c0_6 = arith.constant 0 : index
    %c0_7 = arith.constant 0 : index
    %5 = vector.load %arg5[%c0_6, %c0_7] : memref<1x128xf32, #tpu.memory_space<vmem>>, vector<1x128xf32>
    %6 = vector.broadcast %5 : vector<1x128xf32> to vector<8x128xf32>
    %7 = arith.addf %3, %6 : vector<8x128xf32>
    %c0_8 = arith.constant 0 : index
    %c0_9 = arith.constant 0 : index
    %8 = vector.load %arg6[%c0_8, %c0_9] : memref<1x128xf32, #tpu.memory_space<vmem>>, vector<1x128xf32>
    %9 = vector.broadcast %8 : vector<1x128xf32> to vector<8x128xf32>
    %10 = arith.addf %4, %9 : vector<8x128xf32>
    %11 = arith.negf %10 : vector<8x128xf32>
    %12 = math.exp %11 : vector<8x128xf32>
    %cst_10 = arith.constant 1.000000e+00 : f32
    %13 = vector.broadcast %cst_10 : f32 to vector<8x128xf32>
    %14 = arith.addf %13, %12 : vector<8x128xf32>
    %15 = arith.divf %13, %14 : vector<8x128xf32>
    %16 = arith.mulf %7, %15 : vector<8x128xf32>
    %c0_11 = arith.constant 0 : index
    %c0_12 = arith.constant 0 : index
    %17 = vector.load %arg7[%c0_11, %c0_12] : memref<8x128xf32, #tpu.memory_space<vmem>>, vector<8x128xf32>
    tpu.vector_store %arg7[%c0_11, %c0_12], %16 {strides = array<i32>} : memref<8x128xf32, #tpu.memory_space<vmem>>, vector<8x128xf32>,
    return
  }
  func.func @transform_0(%arg0: i32, %arg1: i32) -> (i32, i32) {
    %c0_i32 = arith.constant 0 : i32
    %c0_i32_0 = arith.constant 0 : i32
    return %arg1, %c0_i32 : i32, i32
  }
  func.func @transform_1(%arg0: i32, %arg1: i32) -> (i32, i32) {
    %c0_i32 = arith.constant 0 : i32
    %c0_i32_0 = arith.constant 0 : i32
    return %c0_i32, %arg0 : i32, i32
  }
  func.func @transform_2(%arg0: i32, %arg1: i32) -> (i32, i32) {
    %c0_i32 = arith.constant 0 : i32
    %c0_i32_0 = arith.constant 0 : i32
    return %c0_i32, %arg0 : i32, i32
  }
  func.func @transform_3(%arg0: i32, %arg1: i32) -> (i32, i32) {
    %c0_i32 = arith.constant 0 : i32
    %c0_i32_0 = arith.constant 0 : i32
    return %c0_i32, %arg0 : i32, i32
  }
  func.func @transform_4(%arg0: i32, %arg1: i32) -> (i32, i32) {
    %c0_i32 = arith.constant 0 : i32
    %c0_i32_0 = arith.constant 0 : i32
    return %c0_i32, %arg0 : i32, i32
  }
  func.func @transform_5(%arg0: i32, %arg1: i32) -> (i32, i32) {
    %c0_i32 = arith.constant 0 : i32
    return %arg1, %arg0 : i32, i32
  }
}

</mosaic_0001>

<llo_original>
// kernel: tpu_custom_call.1
$region0: #{tpu_custom_call.1}
  #allocation0 [shape = 'u32[]', space=smem, size = 0x4, offset = 0x4, fixed_abs, tag = 'smem constant byte address 0x4 - core index']
  #allocation1 [shape = 'u32[72,128]{1,0:T(1,128)}', space=vmem, size = 0x9000, scoped, tag = 'internal scratch']
  %s0 = inlined_call_operand.hbm [shape: f32[8,96], index: 0, kind: input, shape index: {}]
  %s1 = inlined_call_operand.hbm [shape: f32[96,128], index: 1, kind: input, shape index: {}]
  %s2 = inlined_call_operand.hbm [shape: f32[96,128], index: 2, kind: input, shape index: {}]
  %s3 = inlined_call_operand.vmem [shape: f32[1,128], index: 3, kind: input, shape index: {}]
  %s4 = inlined_call_operand.vmem [shape: f32[1,128], index: 4, kind: input, shape index: {}]
  %s5 = inlined_call_operand.hbm [shape: f32[8,128], index: 5, kind: output, shape index: {}]
  %s6 = sld [smem:[#allocation0]]
  $region42: #{tpu_custom_call.1} parent=0
    _
  %s8 = ssub.s32 1, %s6
  %s9 = scalar_select 0, %s8, %s6
  $region1: #{tpu_custom_call.1} parent=0
    #allocation2 [shape = 'u8[4096]{0}', space=vmem, size = 0x1000, scoped, tag = 'input window, operand 0, single buffered']
    #allocation3 [shape = 's32[1]{0}', space=sflag, size = 0x4, scoped, tag = 'scoped memory for tpu_custom_call.1']
    #allocation4 [shape = 's32[1]{0}', space=sflag, size = 0x4, scoped, tag = 'scoped memory for tpu_custom_call.1']
    #allocation5 [shape = 'u8[49152]{0}', space=vmem, size = 0xc000, scoped, tag = 'input window, operand 1, single buffered']
    #allocation6 [shape = 's32[1]{0}', space=sflag, size = 0x4, scoped, tag = 'scoped memory for tpu_custom_call.1']
    #allocation7 [shape = 'u8[49152]{0}', space=vmem, size = 0xc000, scoped, tag = 'input window, operand 2, single buffered']
    #allocation8 [shape = 'u8[4096]{0}', space=vmem, size = 0x1000, scoped, tag = 'output window, operand 0, single buffered']
    %10 = vsyncpa [#allocation3], 0
    %11 = vsyncpa [#allocation6], 0
    %12 = vsyncpa [#allocation4], 0
    // Predicated region
    $region2: #{tpu_custom_call.1} parent=1 // pred_check
      _
    $region3: #{tpu_custom_call.1} parent=1 // pred_check_branch
      %14 = sbr.rel (0) target = $region5
    $region4: #{tpu_custom_call.1} parent=1 // pred_region
      %16 = vsyncadd [#allocation3], 0
      %s18 = sshll.u32 %s0, 4
      %s19 = int_to_ptr.hbm [resolvable:$true] %s18
      %s20 = sshll.u32 [#allocation2], 4
      %s21 = int_to_ptr.vmem [resolvable:$true] %s20
      %23 = dma.hbm_to_vmem [thread:$0]  %s19, 128, %s21, [#allocation3]
    $region5: #{tpu_custom_call.1} parent=1 // pred_fallthru
      _
    // Predicated region
    $region6: #{tpu_custom_call.1} parent=1 // pred_check
      _
    $region7: #{tpu_custom_call.1} parent=1 // pred_check_branch
      %25 = sbr.rel (0) target = $region9
    $region8: #{tpu_custom_call.1} parent=1 // pred_region
      %27 = vsyncadd [#allocation6], 0
      %s28 = sshll.u32 %s1, 4
      %s29 = int_to_ptr.hbm [resolvable:$true] %s28
      %s30 = sshll.u32 [#allocation5], 4
      %s31 = int_to_ptr.vmem [resolvable:$true] %s30
      %36 = dma.hbm_to_vmem [thread:$0]  %s29, 1536, %s31, [#allocation6], 128, 128, 8
    $region9: #{tpu_custom_call.1} parent=1 // pred_fallthru
      _
    // Predicated region
    $region10: #{tpu_custom_call.1} parent=1 // pred_check
      _
    $region11: #{tpu_custom_call.1} parent=1 // pred_check_branch
      %38 = sbr.rel (0) target = $region13
    $region12: #{tpu_custom_call.1} parent=1 // pred_region
      %40 = vsyncadd [#allocation6], 0
      %s41 = sshll.u32 %s2, 4
      %s42 = int_to_ptr.hbm [resolvable:$true] %s41
      %s43 = sshll.u32 [#allocation7], 4
      %s44 = int_to_ptr.vmem [resolvable:$true] %s43
      %49 = dma.hbm_to_vmem [thread:$0]  %s42, 1536, %s44, [#allocation6], 128, 128, 8
    $region13: #{tpu_custom_call.1} parent=1 // pred_fallthru
      _
    // Predicated region
    $region14: #{tpu_custom_call.1} parent=1 // pred_check
      _
    $region15: #{tpu_custom_call.1} parent=1 // pred_check_branch
      %51 = sbr.rel (0) target = $region17
    $region16: #{tpu_custom_call.1} parent=1 // pred_region
      _
    $region17: #{tpu_custom_call.1} parent=1 // pred_fallthru
      _
    // Predicated region
    $region18: #{tpu_custom_call.1} parent=1 // pred_check
      _
    $region19: #{tpu_custom_call.1} parent=1 // pred_check_branch
      %53 = sbr.rel (0) target = $region21
    $region20: #{tpu_custom_call.1} parent=1 // pred_region
      _
    $region21: #{tpu_custom_call.1} parent=1 // pred_fallthru
      _
    // Predicated region
    $region22: #{tpu_custom_call.1} parent=1 // pred_check
      _
    $region23: #{tpu_custom_call.1} parent=1 // pred_check_branch
      %55 = sbr.rel (0) target = $region25
    $region24: #{tpu_custom_call.1} parent=1 // pred_region
      %57 = dma.done [#allocation3], 128
    $region25: #{tpu_custom_call.1} parent=1 // pred_fallthru
      _
    // Predicated region
    $region26: #{tpu_custom_call.1} parent=1 // pred_check
      _
    $region27: #{tpu_custom_call.1} parent=1 // pred_check_branch
      %59 = sbr.rel (0) target = $region29
    $region28: #{tpu_custom_call.1} parent=1 // pred_region
      %61 = dma.done [#allocation6], 1536
    $region29: #{tpu_custom_call.1} parent=1 // pred_fallthru
      _
    // Predicated region
    $region30: #{tpu_custom_call.1} parent=1 // pred_check
      _
    $region31: #{tpu_custom_call.1} parent=1 // pred_check_branch
      %63 = sbr.rel (0) target = $region33
    $region32: #{tpu_custom_call.1} parent=1 // pred_region
      %65 = dma.done [#allocation6], 1536
    $region33: #{tpu_custom_call.1} parent=1 // pred_fallthru
      _
    %v66 = vld [vmem:[#allocation2] sm:$0xff]
    %v67 = vld [vmem:[#allocation5] sm:$0xff]
    %v68 = vld [vmem:[#allocation5 + $0x8] sm:$0xff]
    %v69 = vld [vmem:[#allocation5 + $0x10] sm:$0xff]
    %v70 = vld [vmem:[#allocation5 + $0x18] sm:$0xff]
    %v71 = vld [vmem:[#allocation5 + $0x20] sm:$0xff]
    %v72 = vld [vmem:[#allocation5 + $0x28] sm:$0xff]
    %v73 = vld [vmem:[#allocation5 + $0x30] sm:$0xff]
    %v74 = vld [vmem:[#allocation5 + $0x38] sm:$0xff]
    %v75 = vld [vmem:[#allocation5 + $0x40] sm:$0xff]
    %v76 = vld [vmem:[#allocation5 + $0x48] sm:$0xff]
    %v77 = vld [vmem:[#allocation5 + $0x50] sm:$0xff]
    %v78 = vld [vmem:[#allocation5 + $0x58] sm:$0xff]
    %v79 = vld [vmem:[#allocation7] sm:$0xff]
    %v80 = vld [vmem:[#allocation7 + $0x8] sm:$0xff]
    %v81 = vld [vmem:[#allocation7 + $0x10] sm:$0xff]
    %v82 = vld [vmem:[#allocation7 + $0x18] sm:$0xff]
    %v83 = vld [vmem:[#allocation7 + $0x20] sm:$0xff]
    %v84 = vld [vmem:[#allocation7 + $0x28] sm:$0xff]
    %v85 = vld [vmem:[#allocation7 + $0x30] sm:$0xff]
    %v86 = vld [vmem:[#allocation7 + $0x38] sm:$0xff]
    %v87 = vld [vmem:[#allocation7 + $0x40] sm:$0xff]
    %v88 = vld [vmem:[#allocation7 + $0x48] sm:$0xff]
    %v89 = vld [vmem:[#allocation7 + $0x50] sm:$0xff]
    %v90 = vld [vmem:[#allocation7 + $0x58] sm:$0xff]
    %v91 = vld [vmem:[%s3] sm:$0x1]
    %v93 = vperm.slane %v91, 0
    %vm95 = vcmask 785408
    %v97 = vsel %vm95, %v66, 0
    %99 = vmatpush.msra.mxu0 0.0
    %100 = vmatpush.msra.mxu0 0.0
    %101 = vmatpush.msra.mxu0 0.0
    %102 = vmatpush.msra.mxu0 0.0
    %103 = vmatpush.msra.mxu0 %v78
    %104 = vmatpush.msra.mxu0 %v77
    %105 = vmatpush.msra.mxu0 %v76
    %106 = vmatpush.msra.mxu0 %v75
    %107 = vmatpush.msra.mxu0 %v74
    %108 = vmatpush.msra.mxu0 %v73
    %109 = vmatpush.msra.mxu0 %v72
    %110 = vmatpush.msra.mxu0 %v71
    %111 = vmatpush.msra.mxu0 %v70
    %112 = vmatpush.msra.mxu0 %v69
    %113 = vmatpush.msra.mxu0 %v68
    %114 = vmatpush.msra.mxu0 %v67
    %115 = vmatmul.f32.gmra.mxu0 %v97
    %v116 = vpop.f32.mrf.mxu0
    %v117 = vadd.f32 %v93, %v116
    %118 = vdwg.mxu0
    %v119 = vld [vmem:[%s4] sm:$0x1]
    %v121 = vperm.slane %v119, 0
    %123 = vmatpush.msra.mxu0 0.0
    %124 = vmatpush.msra.mxu0 0.0
    %125 = vmatpush.msra.mxu0 0.0
    %126 = vmatpush.msra.mxu0 0.0
    %127 = vmatpush.msra.mxu0 %v90
    %128 = vmatpush.msra.mxu0 %v89
    %129 = vmatpush.msra.mxu0 %v88
    %130 = vmatpush.msra.mxu0 %v87
    %131 = vmatpush.msra.mxu0 %v86
    %132 = vmatpush.msra.mxu0 %v85
    %133 = vmatpush.msra.mxu0 %v84
    %134 = vmatpush.msra.mxu0 %v83
    %135 = vmatpush.msra.mxu0 %v82
    %136 = vmatpush.msra.mxu0 %v81
    %137 = vmatpush.msra.mxu0 %v80
    %138 = vmatpush.msra.mxu0 %v79
    %139 = vmatmul.f32.gmra.mxu0 %v97
    %v140 = vpop.f32.mrf.mxu0
    %v141 = vadd.f32 %v121, %v140
    %142 = vdwg.mxu0
    %v143 = vxor.u32 %v141, 2147483648
    %v144 = vmul.f32 %v143, 1.442695
    %v145 = vpow.pop %v144
    %v146 = vadd.f32 %v145, 1.0
    %v147 = vrcp.pop %v146
    %v148 = vmul.f32 %v146, %v147
    %v149 = vsub.f32 1.0, %v148
    %v150 = vmul.f32 %v147, %v149
    %v151 = vadd.f32 %v147, %v150
    %vm152 = vweird.f32 %v146
    %vm153 = vweird.f32 %v147
    %vm154 = vmor %vm152, %vm153
    %v155 = vsel %vm154, %v147, %v151
    %v156 = vand.u32 2147483647, %v146
    %vm157 = vcmp.eq.f32.partialorder %v156, 8.507059e+37
    %v158 = vand.u32 %v146, 2147483648
    %v159 = vor.u32 1.1754944e-38, %v158
    %v160 = vsel %vm157, %v159, %v155
    %v161 = vmul.f32 1.0, %v160
    %v162 = vmul.f32 %v117, %v161
    %163 = vst [vmem:[#allocation8] sm:$0xff] %v162
    // Predicated region
    $region34: #{tpu_custom_call.1} parent=1 // pred_check
      _
    $region35: #{tpu_custom_call.1} parent=1 // pred_check_branch
      %165 = sbr.rel (0) target = $region37
    $region36: #{tpu_custom_call.1} parent=1 // pred_region
      %167 = vsyncadd [#allocation4], 0
      %s169 = sshll.u32 [#allocation8], 4
      %s170 = int_to_ptr.vmem [resolvable:$true] %s169
      %s171 = sshll.u32 %s5, 4
      %s172 = int_to_ptr.hbm [resolvable:$true] %s171
      %174 = dma.vmem_to_hbm [thread:$0]  %s170, 128, %s172, [#allocation4]
    $region37: #{tpu_custom_call.1} parent=1 // pred_fallthru
      _
    // Predicated region
    $region38: #{tpu_custom_call.1} parent=1 // pred_check
      _
    $region39: #{tpu_custom_call.1} parent=1 // pred_check_branch
      %176 = sbr.rel (0) target = $region41
    $region40: #{tpu_custom_call.1} parent=1 // pred_region
      %178 = dma.done [#allocation4], 128
    $region41: #{tpu_custom_call.1} parent=1 // pred_fallthru
      _
    %179 = vsyncpa [#allocation3], 1
    %180 = vsyncpa [#allocation6], 1
    %181 = vsyncpa [#allocation4], 1

</llo_original>
